<compile_context>
chip_gen: v7x
topology: tpu7x:2x2x1
jax: 0.10.0
libtpu: 0.0.40
codegen_flags: <defaults>
</compile_context>

<pallas_src>
import jax
import jax.numpy as jnp
from jax.experimental import pallas as pl
from jax.experimental.pallas import tpu as pltpu

# ---- small shapes consistent with the module --------------------------------
B = 2             # batch
S = 8             # encoder sequence length
E = 32            # embed_dim (== LSTM hidden size == encoder feature dim)
NH = 4            # num_heads
HD = E // NH      # head_dim
V = 32            # vocab_size
LANES = 128       # lane width of the packed weight slab


def _round8(n):
    return ((n + 7) // 8) * 8


def _make_slab_layout():
    """Row layout of the packed f32 weight slab (every entry 8-row aligned)."""
    entries = [
        ("sa_q_w", (E, E)), ("sa_q_b", (1, E)),        # self-attn (scale folded into q)
        ("sa_k_w", (E, E)), ("sa_k_b", (1, E)),
        ("sa_v_w", (E, E)), ("sa_v_b", (1, E)),
        ("ca_q_w", (E, E)), ("ca_q_b", (1, E)),        # cross-attn (scale folded into q)
        ("lstm_w", (3 * E, 4 * E)), ("lstm_b", (1, 4 * E)),
        ("fc_w", (E, V)), ("fc_b", (1, V)),
        ("m1", (E, NH)), ("m2", (NH, E)),              # head-membership masks
    ]
    layout, off = {}, 0
    for name, shape in entries:
        layout[name] = (off, shape)
        off += _round8(shape[0])
    return layout, off


SLAB_LAYOUT, SLAB_ROWS = _make_slab_layout()


def _vmem():
    return pl.BlockSpec(memory_space=pltpu.MemorySpace.VMEM)


# =============================================================================
# Kernel 1: per-sequence (step-invariant) cross-attention K/V projection.
# =============================================================================
def encoder_kv_kernel(enc_ref, kvw_ref, kvb_ref, out_ref):
    b, s, e = enc_ref.shape
    enc2 = enc_ref[...].reshape(b * s, e)
    kv = jnp.dot(enc2, kvw_ref[...], preferred_element_type=jnp.float32) + kvb_ref[...]
    out_ref[...] = kv.reshape(b, s, 2 * e)


def precompute_encoder_kv(packed, encoder_outputs):
    b, s, e = encoder_outputs.shape
    return pl.pallas_call(
        encoder_kv_kernel,
        in_specs=[_vmem() for _ in range(3)],
        out_specs=_vmem(),
        out_shape=jax.ShapeDtypeStruct((b, s, 2 * e), jnp.float32),
    )(encoder_outputs, packed["ca_kv_w"], packed["ca_kv_b"])


# =============================================================================
# Kernel 2: fused decoder step (self-attn + cross-attn + LSTM cell + fc_out).
# =============================================================================
def _decoder_step_body(emb_ref, ctx_ref, enc_kv_ref, h_ref, c_ref, w_ref,
                       out_ref, *, step0):
    def W(name):
        off, (r, c) = SLAB_LAYOUT[name]
        return w_ref[off:off + r, 0:c]

    emb = emb_ref[...]                      # (B, E)
    h = h_ref[...]                          # (B, E)
    c = c_ref[...]                          # (B, E)
    e = emb.shape[1]
    m1 = W("m1")                            # (E, NH) head membership (0/1)
    m2 = W("m2")                            # (NH, E)
    nh = m1.shape[1]

    def bd_attn_batched(q, k, v):
        """Block-diag multi-head attention, one query per batch row.

        q (B,E), k/v (B,T,E) with B*T a multiple of 8 (encoder path).
        The 1/sqrt(head_dim) scale is pre-folded into the Q projection.
        """
        b_, t_, e_ = k.shape
        p = (q[:, None, :] * k).reshape(b_ * t_, e_)
        s = jnp.dot(p, m1, preferred_element_type=jnp.float32).reshape(b_, t_, nh)
        s = s - jnp.max(s, axis=1, keepdims=True)
        es = jnp.exp(s)
        w = es / jnp.sum(es, axis=1, keepdims=True)
        we = jnp.dot(w.reshape(b_ * t_, nh), m2,
                     preferred_element_type=jnp.float32).reshape(b_, t_, e_)
        return jnp.sum(we * v, axis=1)                                  # (B, E)

    # ---- self-attention ------------------------------------------------------
    if step0:
        # T_ctx == 1: softmax over one key is identically 1, so the attention
        # output is exactly the V projection of the embedded token.
        self_attn = (jnp.dot(emb, W("sa_v_w"), preferred_element_type=jnp.float32)
                     + W("sa_v_b"))
    else:
        q_sa = (jnp.dot(emb, W("sa_q_w"), preferred_element_type=jnp.float32)
                + W("sa_q_b"))
        rows = []
        for b_i in range(emb.shape[0]):      # static unroll over tiny batch
            ctx_b = ctx_ref[b_i]             # (T, E), T arbitrary (not 8-aligned)
            k_b = (jnp.dot(ctx_b, W("sa_k_w"), preferred_element_type=jnp.float32)
                   + W("sa_k_b"))
            v_b = (jnp.dot(ctx_b, W("sa_v_w"), preferred_element_type=jnp.float32)
                   + W("sa_v_b"))
            p = q_sa[b_i:b_i + 1, :] * k_b                               # (T, E)
            s = jnp.dot(p, m1, preferred_element_type=jnp.float32)      # (T, NH)
            s = s - jnp.max(s, axis=0, keepdims=True)
            es = jnp.exp(s)
            wgt = es / jnp.sum(es, axis=0, keepdims=True)
            we = jnp.dot(wgt, m2, preferred_element_type=jnp.float32)   # (T, E)
            rows.append(jnp.sum(we * v_b, axis=0, keepdims=True))       # (1, E)
        self_attn = jnp.concatenate(rows, axis=0)                       # (B, E)

    # ---- cross-attention over the pre-projected encoder K/V -------------------
    q_ca = (jnp.dot(self_attn, W("ca_q_w"), preferred_element_type=jnp.float32)
            + W("ca_q_b"))
    enc_kv = enc_kv_ref[...]                                            # (B, S, 2E)
    cross_attn = bd_attn_batched(q_ca, enc_kv[:, :, :e], enc_kv[:, :, e:])

    # ---- fused single-step LSTM: [emb | cross | h] @ [W_ih ; W_hh] ------------
    x = jnp.concatenate([emb, cross_attn, h], axis=-1)                  # (B, 3E)
    gates = (jnp.dot(x, W("lstm_w"), preferred_element_type=jnp.float32)
             + W("lstm_b"))                                             # (B, 4E)
    # gate columns pre-ordered [i | f | o | g] -> one sigmoid slab + one tanh slab
    sig = jax.nn.sigmoid(gates[:, :3 * e])
    g = jnp.tanh(gates[:, 3 * e:])
    i_g = sig[:, 0:e]
    f_g = sig[:, e:2 * e]
    o_g = sig[:, 2 * e:3 * e]
    c_new = f_g * c + i_g * g
    h_new = o_g * jnp.tanh(c_new)

    # ---- vocab projection; single packed (B, V + 2E) output -------------------
    logits = (jnp.dot(h_new, W("fc_w"), preferred_element_type=jnp.float32)
              + W("fc_b"))
    v_sz = logits.shape[1]
    out_ref[:, 0:v_sz] = logits
    out_ref[:, v_sz:v_sz + e] = h_new
    out_ref[:, v_sz + e:v_sz + 2 * e] = c_new


def decoder_step0_kernel(emb_ref, enc_kv_ref, h_ref, c_ref, w_ref, out_ref):
    _decoder_step_body(emb_ref, None, enc_kv_ref, h_ref, c_ref, w_ref, out_ref,
                       step0=True)


def decoder_general_kernel(emb_ref, ctx_ref, enc_kv_ref, h_ref, c_ref, w_ref,
                           out_ref):
    _decoder_step_body(emb_ref, ctx_ref, enc_kv_ref, h_ref, c_ref, w_ref, out_ref,
                       step0=False)


# =============================================================================
# DecoderSACA.forward equivalent.
# =============================================================================
def decoder_saca_forward(packed, target_token, encoder_outputs,
                         decoder_hidden_state, decoder_cell_state,
                         decoder_tokens=None, decoder_step=0,
                         encoder_kv=None):
    """target_token (B,1), encoder_outputs (B,S,E), hidden/cell (1,B,E)
    -> logits (B,V), hidden (1,B,E), cell (1,B,E)."""
    emb = jnp.take(packed["embedding"], target_token[:, 0], axis=0)     # (B, E)
    if encoder_kv is None:
        # Step-invariant: in a decode loop, compute once and pass it in.
        encoder_kv = precompute_encoder_kv(packed, encoder_outputs)
    h = decoder_hidden_state[0]
    c = decoder_cell_state[0]
    b, e = emb.shape
    v = SLAB_LAYOUT["fc_w"][1][1]
    out_w = v + 2 * e

    if decoder_step > 0:
        # TODO(synk): kv_cache path (in-place torch tensor mutation) not implemented.
        assert decoder_tokens is not None, "decoder_step>0 requires decoder_tokens"
        ctx = jnp.take(packed["embedding"], decoder_tokens, axis=0)     # (B, T, E)
        packed_out = pl.pallas_call(
            decoder_general_kernel,
            in_specs=[_vmem() for _ in range(6)],
            out_specs=_vmem(),
            out_shape=jax.ShapeDtypeStruct((b, out_w), jnp.float32),
        )(emb, ctx, encoder_kv, h, c, packed["slab"])
    else:
        packed_out = pl.pallas_call(
            decoder_step0_kernel,
            in_specs=[_vmem() for _ in range(5)],
            out_specs=_vmem(),
            out_shape=jax.ShapeDtypeStruct((b, out_w), jnp.float32),
        )(emb, encoder_kv, h, c, packed["slab"])

    logits = packed_out[:, 0:v]
    h_new = packed_out[:, v:v + e]
    c_new = packed_out[:, v + e:v + 2 * e]
    return logits, h_new[None], c_new[None]


# =============================================================================
# Parameters (mirroring the PyTorch module) + one-time packing transform.
# =============================================================================
def init_params(key):
    """Per-layer parameters mirroring the PyTorch module (weights stored as
    (in_dim, out_dim), i.e. transposed from torch's nn.Linear)."""
    ks = jax.random.split(key, 19)

    def w(k, shape, scale=0.1):
        return scale * jax.random.normal(k, shape, dtype=jnp.float32)

    return {
        "embedding": w(ks[0], (V, E)),
        "sa_q_w": w(ks[1], (E, E)), "sa_q_b": w(ks[2], (1, E)),
        "sa_k_w": w(ks[3], (E, E)), "sa_k_b": w(ks[4], (1, E)),
        "sa_v_w": w(ks[5], (E, E)), "sa_v_b": w(ks[6], (1, E)),
        "ca_q_w": w(ks[7], (E, E)), "ca_q_b": w(ks[8], (1, E)),
        "ca_k_w": w(ks[9], (E, E)), "ca_k_b": w(ks[10], (1, E)),
        "ca_v_w": w(ks[11], (E, E)), "ca_v_b": w(ks[12], (1, E)),
        # single-layer LSTM; gate column order [i | f | o | g].
        # NOTE: PyTorch LSTM stores [i | f | g | o]; permute columns when
        # loading real checkpoints.
        "lstm_w_ih": w(ks[13], (2 * E, 4 * E)),
        "lstm_w_hh": w(ks[14], (E, 4 * E)),
        "lstm_b_ih": w(ks[15], (1, 4 * E)),
        "lstm_b_hh": w(ks[16], (1, 4 * E)),
        "fc_w": w(ks[17], (E, V)), "fc_b": w(ks[18], (1, V)),
    }


def pack_params(p):
    """One-time weight transform: fold the attention scale into the Q
    projections, fuse the LSTM weights, and pack everything the per-step
    kernel needs into a single (SLAB_ROWS, 128) f32 VMEM slab."""
    scale = HD ** -0.5
    head = jnp.arange(E, dtype=jnp.int32) // HD
    m1 = (head[:, None] == jnp.arange(NH, dtype=jnp.int32)[None, :]).astype(jnp.float32)
    vals = {
        "sa_q_w": p["sa_q_w"] * scale, "sa_q_b": p["sa_q_b"] * scale,
        "sa_k_w": p["sa_k_w"], "sa_k_b": p["sa_k_b"],
        "sa_v_w": p["sa_v_w"], "sa_v_b": p["sa_v_b"],
        "ca_q_w": p["ca_q_w"] * scale, "ca_q_b": p["ca_q_b"] * scale,
        "lstm_w": jnp.concatenate([p["lstm_w_ih"], p["lstm_w_hh"]], axis=0),
        "lstm_b": p["lstm_b_ih"] + p["lstm_b_hh"],
        "fc_w": p["fc_w"], "fc_b": p["fc_b"],
        "m1": m1, "m2": m1.T,
    }
    slab = jnp.zeros((SLAB_ROWS, LANES), jnp.float32)
    for name, (off, shape) in SLAB_LAYOUT.items():
        r, c = shape
        slab = slab.at[off:off + r, 0:c].set(vals[name])
    return {
        "slab": slab,
        "embedding": p["embedding"],
        # cross-attn K/V projection (used only by the per-sequence kernel)
        "ca_kv_w": jnp.concatenate([p["ca_k_w"], p["ca_v_w"]], axis=1),  # (E, 2E)
        "ca_kv_b": jnp.concatenate([p["ca_k_b"], p["ca_v_b"]], axis=1),  # (1, 2E)
    }


# =============================================================================
# Pure-JAX reference (mirrors the PyTorch module exactly) for correctness.
# =============================================================================
def reference_forward(params, target_token, encoder_outputs, h0, c0,
                      decoder_tokens=None, decoder_step=0):
    emb = jnp.take(params["embedding"], target_token[:, 0], axis=0)      # (B, E)
    if decoder_step > 0:
        ctx = jnp.take(params["embedding"], decoder_tokens, axis=0)      # (B, T, E)
    else:
        ctx = emb[:, None, :]                                            # (B, 1, E)

    def mha(q, kv, pre):
        bq, t, e = kv.shape
        Q = q @ params[pre + "_q_w"] + params[pre + "_q_b"]
        K = kv @ params[pre + "_k_w"] + params[pre + "_k_b"]
        Vv = kv @ params[pre + "_v_w"] + params[pre + "_v_b"]
        Qh = Q.reshape(bq, NH, HD)
        Kh = K.reshape(bq, t, NH, HD).transpose(0, 2, 1, 3)
        Vh = Vv.reshape(bq, t, NH, HD).transpose(0, 2, 1, 3)
        sc = jnp.einsum('bhd,bhtd->bht', Qh, Kh) * (HD ** -0.5)
        w = jax.nn.softmax(sc, axis=-1)
        out = jnp.einsum('bht,bhtd->bhd', w, Vh)
        return out.reshape(bq, E)     # no output projection (as in the module)

    sa = mha(emb, ctx, "sa")
    ca = mha(sa, encoder_outputs, "ca")
    h, c = h0[0], c0[0]
    x = jnp.concatenate([emb, ca], axis=-1)                              # (B, 2E)
    gates = (x @ params["lstm_w_ih"] + h @ params["lstm_w_hh"]
             + params["lstm_b_ih"] + params["lstm_b_hh"])
    i = jax.nn.sigmoid(gates[:, 0:E])
    f = jax.nn.sigmoid(gates[:, E:2 * E])
    o = jax.nn.sigmoid(gates[:, 2 * E:3 * E])
    g = jnp.tanh(gates[:, 3 * E:])
    c_new = f * c + i * g
    h_new = o * jnp.tanh(c_new)
    logits = h_new @ params["fc_w"] + params["fc_b"]
    return logits, h_new[None], c_new[None]


if __name__ == "__main__":
    key = jax.random.PRNGKey(0)
    k_p, k_tok, k_enc, k_h, k_c, k_ctx = jax.random.split(key, 6)

    params = init_params(k_p)
    packed = pack_params(params)

    target_token = jax.random.randint(k_tok, (B, 1), 0, V, dtype=jnp.int32)
    encoder_outputs = 0.1 * jax.random.normal(k_enc, (B, S, E), dtype=jnp.float32)
    h0 = 0.1 * jax.random.normal(k_h, (1, B, E), dtype=jnp.float32)
    c0 = 0.1 * jax.random.normal(k_c, (1, B, E), dtype=jnp.float32)

    fwd = jax.jit(decoder_saca_forward, static_argnames=("decoder_step",))

    # ---- default path (decoder_step == 0) ------------------------------------
    logits, h_new, c_new = jax.block_until_ready(
        fwd(packed, target_token, encoder_outputs, h0, c0))
    assert logits.shape == (B, V), logits.shape
    assert h_new.shape == (1, B, E), h_new.shape
    assert c_new.shape == (1, B, E), c_new.shape
    assert bool(jnp.all(jnp.isfinite(logits)))
    assert bool(jnp.all(jnp.isfinite(h_new)))
    assert bool(jnp.all(jnp.isfinite(c_new)))

    r_logits, r_h, r_c = reference_forward(params, target_token, encoder_outputs, h0, c0)
    assert bool(jnp.allclose(logits, r_logits, rtol=2e-3, atol=2e-3))
    assert bool(jnp.allclose(h_new, r_h, rtol=2e-3, atol=2e-3))
    assert bool(jnp.allclose(c_new, r_c, rtol=2e-3, atol=2e-3))

    # ---- decoder_step > 0 path (full self-attention over prior tokens) -------
    t_ctx = 3
    decoder_tokens = jax.random.randint(k_ctx, (B, t_ctx), 0, V, dtype=jnp.int32)
    logits2, h2, c2 = jax.block_until_ready(
        fwd(packed, target_token, encoder_outputs, h0, c0,
            decoder_tokens=decoder_tokens, decoder_step=t_ctx))
    r_logits2, r_h2, r_c2 = reference_forward(
        params, target_token, encoder_outputs, h0, c0,
        decoder_tokens=decoder_tokens, decoder_step=t_ctx)
    assert bool(jnp.allclose(logits2, r_logits2, rtol=2e-3, atol=2e-3))
    assert bool(jnp.allclose(h2, r_h2, rtol=2e-3, atol=2e-3))
    assert bool(jnp.allclose(c2, r_c2, rtol=2e-3, atol=2e-3))

    print("KERNEL_OK")
</pallas_src>

<mosaic_0001>
module attributes {stable_mosaic.version = 11 : i64} {
  func.func @encoder_kv_kernel(%arg0: memref<2x8x32xf32, #tpu.memory_space<vmem>>, %arg1: memref<32x64xf32, #tpu.memory_space<vmem>>, %arg2: memref<1x64xf32, #tpu.memory_space<vmem>>, %arg3: memref<2x8x64xf32, #tpu.memory_space<vmem>>) attributes {dimension_semantics = [], scalar_prefetch = 0 : i64, scratch_operands = 0 : i64, tpu.core_type = #tpu.core_type<tc>} {
    %c0 = arith.constant 0 : index
    %c0_0 = arith.constant 0 : index
    %c0_1 = arith.constant 0 : index
    %0 = vector.load %arg0[%c0, %c0_0, %c0_1] : memref<2x8x32xf32, #tpu.memory_space<vmem>>, vector<2x8x32xf32>
    %1 = vector.shape_cast %0 : vector<2x8x32xf32> to vector<16x32xf32>
    %c0_2 = arith.constant 0 : index
    %c0_3 = arith.constant 0 : index
    %2 = vector.load %arg1[%c0_2, %c0_3] : memref<32x64xf32, #tpu.memory_space<vmem>>, vector<32x64xf32>
    %cst = arith.constant dense<0.000000e+00> : vector<16x64xf32>
    %3 = tpu.matmul %1, %2, %cst {dimension_numbers = #tpu.dot_dimension_numbers<[1], [0], [0], [1], [0, 0, 1, 1], [], []>} : vector<16x32xf32>, vector<32x64xf32>, vector<16x64xf32> -> vector<16x64xf32>
    %c0_4 = arith.constant 0 : index
    %c0_5 = arith.constant 0 : index
    %4 = vector.load %arg2[%c0_4, %c0_5] : memref<1x64xf32, #tpu.memory_space<vmem>>, vector<1x64xf32>
    %5 = vector.broadcast %4 : vector<1x64xf32> to vector<16x64xf32>
    %6 = arith.addf %3, %5 : vector<16x64xf32>
    %7 = vector.shape_cast %6 : vector<16x64xf32> to vector<2x8x64xf32>
    %c0_6 = arith.constant 0 : index
    %c0_7 = arith.constant 0 : index
    %c0_8 = arith.constant 0 : index
    %8 = vector.load %arg3[%c0_6, %c0_7, %c0_8] : memref<2x8x64xf32, #tpu.memory_space<vmem>>, vector<2x8x64xf32>
    tpu.vector_store %arg3[%c0_6, %c0_7, %c0_8], %7 {strides = array<i32>} : memref<2x8x64xf32, #tpu.memory_space<vmem>>, vector<2x8x64xf32>,
    return
  }
}

module attributes {stable_mosaic.version = 11 : i64} {
  func.func @decoder_step0_kernel(%arg0: memref<2x32xf32, #tpu.memory_space<vmem>>, %arg1: memref<2x8x64xf32, #tpu.memory_space<vmem>>, %arg2: memref<2x32xf32, #tpu.memory_space<vmem>>, %arg3: memref<2x32xf32, #tpu.memory_space<vmem>>, %arg4: memref<344x128xf32, #tpu.memory_space<vmem>>, %arg5: memref<2x96xf32, #tpu.memory_space<vmem>>) attributes {dimension_semantics = [], scalar_prefetch = 0 : i64, scratch_operands = 0 : i64, tpu.core_type = #tpu.core_type<tc>} {
    %c0 = arith.constant 0 : index
    %c0_0 = arith.constant 0 : index
    %0 = vector.load %arg0[%c0, %c0_0] : memref<2x32xf32, #tpu.memory_space<vmem>>, vector<2x32xf32>
    %c0_1 = arith.constant 0 : index
    %c0_2 = arith.constant 0 : index
    %1 = vector.load %arg2[%c0_1, %c0_2] : memref<2x32xf32, #tpu.memory_space<vmem>>, vector<2x32xf32>
    %c0_3 = arith.constant 0 : index
    %c0_4 = arith.constant 0 : index
    %2 = vector.load %arg3[%c0_3, %c0_4] : memref<2x32xf32, #tpu.memory_space<vmem>>, vector<2x32xf32>
    %c304 = arith.constant 304 : index
    %c0_5 = arith.constant 0 : index
    %3 = vector.load %arg4[%c304, %c0_5] : memref<344x128xf32, #tpu.memory_space<vmem>>, vector<32x4xf32>
    %c336 = arith.constant 336 : index
    %c0_6 = arith.constant 0 : index
    %4 = vector.load %arg4[%c336, %c0_6] : memref<344x128xf32, #tpu.memory_space<vmem>>, vector<4x32xf32>
    %c80 = arith.constant 80 : index
    %c0_7 = arith.constant 0 : index
    %5 = vector.load %arg4[%c80, %c0_7] : memref<344x128xf32, #tpu.memory_space<vmem>>, vector<32x32xf32>
    %cst = arith.constant dense<0.000000e+00> : vector<2x32xf32>
    %6 = tpu.matmul %0, %5, %cst {dimension_numbers = #tpu.dot_dimension_numbers<[1], [0], [0], [1], [0, 0, 1, 1], [], []>} : vector<2x32xf32>, vector<32x32xf32>, vector<2x32xf32> -> vector<2x32xf32>
    %c112 = arith.constant 112 : index
    %c0_8 = arith.constant 0 : index
    %7 = vector.load %arg4[%c112, %c0_8] : memref<344x128xf32, #tpu.memory_space<vmem>>, vector<1x32xf32>
    %8 = vector.broadcast %7 : vector<1x32xf32> to vector<2x32xf32>
    %9 = arith.addf %6, %8 : vector<2x32xf32>
    %c120 = arith.constant 120 : index
    %c0_9 = arith.constant 0 : index
    %10 = vector.load %arg4[%c120, %c0_9] : memref<344x128xf32, #tpu.memory_space<vmem>>, vector<32x32xf32>
    %cst_10 = arith.constant dense<0.000000e+00> : vector<2x32xf32>
    %11 = tpu.matmul %9, %10, %cst_10 {dimension_numbers = #tpu.dot_dimension_numbers<[1], [0], [0], [1], [0, 0, 1, 1], [], []>} : vector<2x32xf32>, vector<32x32xf32>, vector<2x32xf32> -> vector<2x32xf32>
    %c152 = arith.constant 152 : index
    %c0_11 = arith.constant 0 : index
    %12 = vector.load %arg4[%c152, %c0_11] : memref<344x128xf32, #tpu.memory_space<vmem>>, vector<1x32xf32>
    %13 = vector.broadcast %12 : vector<1x32xf32> to vector<2x32xf32>
    %14 = arith.addf %11, %13 : vector<2x32xf32>
    %c0_12 = arith.constant 0 : index
    %c0_13 = arith.constant 0 : index
    %c0_14 = arith.constant 0 : index
    %15 = vector.load %arg1[%c0_12, %c0_13, %c0_14] : memref<2x8x64xf32, #tpu.memory_space<vmem>>, vector<2x8x64xf32>
    %16 = vector.extract_strided_slice %15 {offsets = [0, 0, 0], sizes = [2, 8, 32], strides = [1, 1, 1]} : vector<2x8x64xf32> to vector<2x8x32xf32>
    %17 = vector.extract_strided_slice %15 {offsets = [0, 0, 32], sizes = [2, 8, 32], strides = [1, 1, 1]} : vector<2x8x64xf32> to vector<2x8x32xf32>
    %18 = vector.shape_cast %14 : vector<2x32xf32> to vector<2x1x32xf32>
    %19 = vector.broadcast %18 : vector<2x1x32xf32> to vector<2x8x32xf32>
    %20 = arith.mulf %19, %16 : vector<2x8x32xf32>
    %21 = vector.shape_cast %20 : vector<2x8x32xf32> to vector<16x32xf32>
    %cst_15 = arith.constant dense<0.000000e+00> : vector<16x4xf32>
    %22 = tpu.matmul %21, %3, %cst_15 {dimension_numbers = #tpu.dot_dimension_numbers<[1], [0], [0], [1], [0, 0, 1, 1], [], []>} : vector<16x32xf32>, vector<32x4xf32>, vector<16x4xf32> -> vector<16x4xf32>
    %23 = vector.shape_cast %22 : vector<16x4xf32> to vector<2x8x4xf32>
    %cst_16 = arith.constant dense<0xFF800000> : vector<2x4xf32>
    %24 = vector.multi_reduction <maximumf>, %23, %cst_16 [1] : vector<2x8x4xf32> to vector<2x4xf32>
    %25 = vector.shape_cast %24 : vector<2x4xf32> to vector<2x1x4xf32>
    %26 = vector.broadcast %25 : vector<2x1x4xf32> to vector<2x8x4xf32>
    %27 = arith.subf %23, %26 : vector<2x8x4xf32>
    %28 = math.exp %27 : vector<2x8x4xf32>
    %cst_17 = arith.constant dense<0.000000e+00> : vector<2x4xf32>
    %29 = vector.multi_reduction <add>, %28, %cst_17 [1] : vector<2x8x4xf32> to vector<2x4xf32>
    %30 = vector.shape_cast %29 : vector<2x4xf32> to vector<2x1x4xf32>
    %31 = vector.broadcast %30 : vector<2x1x4xf32> to vector<2x8x4xf32>
    %32 = arith.divf %28, %31 : vector<2x8x4xf32>
    %33 = vector.shape_cast %32 : vector<2x8x4xf32> to vector<16x4xf32>
    %cst_18 = arith.constant dense<0.000000e+00> : vector<16x32xf32>
    %34 = tpu.matmul %33, %4, %cst_18 {dimension_numbers = #tpu.dot_dimension_numbers<[1], [0], [0], [1], [0, 0, 1, 1], [], []>} : vector<16x4xf32>, vector<4x32xf32>, vector<16x32xf32> -> vector<16x32xf32>
    %35 = vector.shape_cast %34 : vector<16x32xf32> to vector<2x8x32xf32>
    %36 = arith.mulf %35, %17 : vector<2x8x32xf32>
    %cst_19 = arith.constant dense<0.000000e+00> : vector<2x32xf32>
    %37 = vector.multi_reduction <add>, %36, %cst_19 [1] : vector<2x8x32xf32> to vector<2x32xf32>
    %38 = tpu.concatenate %0, %37, %1 in 1 : vector<2x32xf32>, vector<2x32xf32>, vector<2x32xf32> -> vector<2x96xf32>
    %c160 = arith.constant 160 : index
    %c0_20 = arith.constant 0 : index
    %39 = vector.load %arg4[%c160, %c0_20] : memref<344x128xf32, #tpu.memory_space<vmem>>, vector<96x128xf32>
    %cst_21 = arith.constant dense<0.000000e+00> : vector<2x128xf32>
    %40 = tpu.matmul %38, %39, %cst_21 {dimension_numbers = #tpu.dot_dimension_numbers<[1], [0], [0], [1], [0, 0, 1, 1], [], []>} : vector<2x96xf32>, vector<96x128xf32>, vector<2x128xf32> -> vector<2x128xf32>
    %c256 = arith.constant 256 : index
    %c0_22 = arith.constant 0 : index
    %41 = vector.load %arg4[%c256, %c0_22] : memref<344x128xf32, #tpu.memory_space<vmem>>, vector<1x128xf32>
    %42 = vector.broadcast %41 : vector<1x128xf32> to vector<2x128xf32>
    %43 = arith.addf %40, %42 : vector<2x128xf32>
    %44 = vector.extract_strided_slice %43 {offsets = [0, 0], sizes = [2, 96], strides = [1, 1]} : vector<2x128xf32> to vector<2x96xf32>
    %45 = arith.negf %44 : vector<2x96xf32>
    %46 = math.exp %45 : vector<2x96xf32>
    %cst_23 = arith.constant 1.000000e+00 : f32
    %47 = vector.broadcast %cst_23 : f32 to vector<2x96xf32>
    %48 = arith.addf %47, %46 : vector<2x96xf32>
    %49 = arith.divf %47, %48 : vector<2x96xf32>
    %50 = vector.extract_strided_slice %43 {offsets = [0, 96], sizes = [2, 32], strides = [1, 1]} : vector<2x128xf32> to vector<2x32xf32>
    %51 = math.tanh %50 : vector<2x32xf32>
    %52 = vector.extract_strided_slice %49 {offsets = [0, 0], sizes = [2, 32], strides = [1, 1]} : vector<2x96xf32> to vector<2x32xf32>
    %53 = vector.extract_strided_slice %49 {offsets = [0, 32], sizes = [2, 32], strides = [1, 1]} : vector<2x96xf32> to vector<2x32xf32>
    %54 = vector.extract_strided_slice %49 {offsets = [0, 64], sizes = [2, 32], strides = [1, 1]} : vector<2x96xf32> to vector<2x32xf32>
    %55 = arith.mulf %53, %2 : vector<2x32xf32>
    %56 = arith.mulf %52, %51 : vector<2x32xf32>
    %57 = arith.addf %55, %56 : vector<2x32xf32>
    %58 = math.tanh %57 : vector<2x32xf32>
    %59 = arith.mulf %54, %58 : vector<2x32xf32>
    %c264 = arith.constant 264 : index
    %c0_24 = arith.constant 0 : index
    %60 = vector.load %arg4[%c264, %c0_24] : memref<344x128xf32, #tpu.memory_space<vmem>>, vector<32x32xf32>
    %cst_25 = arith.constant dense<0.000000e+00> : vector<2x32xf32>
    %61 = tpu.matmul %59, %60, %cst_25 {dimension_numbers = #tpu.dot_dimension_numbers<[1], [0], [0], [1], [0, 0, 1, 1], [], []>} : vector<2x32xf32>, vector<32x32xf32>, vector<2x32xf32> -> vector<2x32xf32>
    %c296 = arith.constant 296 : index
    %c0_26 = arith.constant 0 : index
    %62 = vector.load %arg4[%c296, %c0_26] : memref<344x128xf32, #tpu.memory_space<vmem>>, vector<1x32xf32>
    %63 = vector.broadcast %62 : vector<1x32xf32> to vector<2x32xf32>
    %64 = arith.addf %61, %63 : vector<2x32xf32>
    %c0_27 = arith.constant 0 : index
    %c0_28 = arith.constant 0 : index
    %65 = vector.load %arg5[%c0_27, %c0_28] : memref<2x96xf32, #tpu.memory_space<vmem>>, vector<2x32xf32>
    tpu.vector_store %arg5[%c0_27, %c0_28], %64 {strides = array<i32>} : memref<2x96xf32, #tpu.memory_space<vmem>>, vector<2x32xf32>,
    %c0_29 = arith.constant 0 : index
    %c32 = arith.constant 32 : index
    %66 = vector.load %arg5[%c0_29, %c32] : memref<2x96xf32, #tpu.memory_space<vmem>>, vector<2x32xf32>
    tpu.vector_store %arg5[%c0_29, %c32], %59 {strides = array<i32>} : memref<2x96xf32, #tpu.memory_space<vmem>>, vector<2x32xf32>,
    %c0_30 = arith.constant 0 : index
    %c64 = arith.constant 64 : index
    %67 = vector.load %arg5[%c0_30, %c64] : memref<2x96xf32, #tpu.memory_space<vmem>>, vector<2x32xf32>
    tpu.vector_store %arg5[%c0_30, %c64], %57 {strides = array<i32>} : memref<2x96xf32, #tpu.memory_space<vmem>>, vector<2x32xf32>,
    return
  }
}

</mosaic_0001>

<llo_original>
// kernel: decoder_saca_forward.2
$region0: #{decoder_saca_forward.2}
  #allocation0 [shape = 'u32[]', space=smem, size = 0x4, offset = 0x4, fixed_abs, tag = 'smem constant byte address 0x4 - core index']
  #allocation1 [shape = 'u32[144,128]{1,0:T(1,128)}', space=vmem, size = 0x12000, scoped, tag = 'internal scratch']
  %s0 = inlined_call_operand.vmem [shape: f32[2,8,32], index: 0, kind: input, shape index: {}]
  %s1 = inlined_call_operand.vmem [shape: f32[32,64], index: 1, kind: input, shape index: {}]
  %s2 = inlined_call_operand.vmem [shape: f32[1,64], index: 2, kind: input, shape index: {}]
  %s3 = inlined_call_operand.vmem [shape: f32[2,8,64], index: 3, kind: output, shape index: {}]
  %s4 = sld [smem:[#allocation0]]
  $region22: #{decoder_saca_forward.2} parent=0
    _
  %s6 = ssub.s32 1, %s4
  %s7 = scalar_select 0, %s6, %s4
  // Predicated region
  $region2: #{decoder_saca_forward.2} parent=0 // pred_check
    _
  $region3: #{decoder_saca_forward.2} parent=0 // pred_check_branch
    %9 = sbr.rel (0) target = $region5
  $region4: #{decoder_saca_forward.2} parent=0 // pred_region
    _
  $region5: #{decoder_saca_forward.2} parent=0 // pred_fallthru
    _
  // Predicated region
  $region6: #{decoder_saca_forward.2} parent=0 // pred_check
    _
  $region7: #{decoder_saca_forward.2} parent=0 // pred_check_branch
    %11 = sbr.rel (0) target = $region9
  $region8: #{decoder_saca_forward.2} parent=0 // pred_region
    _
  $region9: #{decoder_saca_forward.2} parent=0 // pred_fallthru
    _
  // Predicated region
  $region10: #{decoder_saca_forward.2} parent=0 // pred_check
    _
  $region11: #{decoder_saca_forward.2} parent=0 // pred_check_branch
    %13 = sbr.rel (0) target = $region13
  $region12: #{decoder_saca_forward.2} parent=0 // pred_region
    _
  $region13: #{decoder_saca_forward.2} parent=0 // pred_fallthru
    _
  %v14 = vld [vmem:[%s0] sm:$0xff]
  %v15 = vld [vmem:[%s0 + $0x8] sm:$0xff]
  %v16 = vld [vmem:[%s1] sm:$0xff]
  %v17 = vld [vmem:[%s1 + $0x8] sm:$0xff]
  %v18 = vld [vmem:[%s1 + $0x10] sm:$0xff]
  %v19 = vld [vmem:[%s1 + $0x18] sm:$0xff]
  %v20 = vld [vmem:[%s2] sm:$0x1]
  %v22 = vlaneseq
  %v23 = vshrl.u32 %v22, 7
  %v24 = vsub.s32 0, %v23
  %v25 = vrot.slane %v20, %v24
  %vm27 = vcmask 261120
  %v29 = vsel %vm27, %v14, 0
  %v32 = vsel %vm27, %v15, 0
  %34 = vmatprep.subr.mxu0 0.0
  %35 = vmatpush1.msra.mxu0 %v16
  %36 = vmatprep.subr.mxu0 0.0
  %37 = vmatpush1.msra.mxu0 %v17
  %38 = vmatprep.subr.mxu0 0.0
  %39 = vmatpush1.msra.mxu0 %v18
  %40 = vmatprep.subr.mxu0 0.0
  %41 = vmatpush1.msra.mxu0 %v19
  %42 = vmatprep.subr.mxu0 0.0
  %43 = vmatpush1.msra.mxu0 0.0
  %44 = vmatprep.subr.mxu0 0.0
  %45 = vmatpush1.msra.mxu0 0.0
  %46 = vmatprep.subr.mxu0 0.0
  %47 = vmatpush1.msra.mxu0 0.0
  %48 = vmatprep.subr.mxu0 0.0
  %49 = vmatpush1.msra.mxu0 0.0
  %50 = vmatprep.subr.mxu0 0.0
  %51 = vmatpush1.msra.mxu0 0.0
  %52 = vmatprep.subr.mxu0 0.0
  %53 = vmatpush1.msra.mxu0 0.0
  %54 = vmatprep.subr.mxu0 0.0
  %55 = vmatpush1.msra.mxu0 0.0
  %56 = vmatprep.subr.mxu0 0.0
  %57 = vmatpush1.msra.mxu0 0.0
  %58 = vmatprep.subr.mxu0 0.0
  %59 = vmatpush1.msra.mxu0 0.0
  %60 = vmatprep.subr.mxu0 0.0
  %61 = vmatpush1.msra.mxu0 0.0
  %62 = vmatprep.subr.mxu0 0.0
  %63 = vmatpush1.msra.mxu0 0.0
  %64 = vmatprep.subr.mxu0 0.0
  %65 = vmatpush1.msra.mxu0 0.0
  %66 = vmatprep.subr.mxu0 0.0
  %67 = vmatpush1.msra.mxu0 0.0
  %68 = vmatprep.subr.mxu0 0.0
  %69 = vmatpush1.msra.mxu0 0.0
  %70 = vmatprep.subr.mxu0 0.0
  %71 = vmatpush1.msra.mxu0 0.0
  %72 = vmatprep.subr.mxu0 0.0
  %73 = vmatpush1.msra.mxu0 0.0
  %74 = vmatprep.subr.mxu0 0.0
  %75 = vmatpush1.msra.mxu0 0.0
  %76 = vmatprep.subr.mxu0 0.0
  %77 = vmatpush1.msra.mxu0 0.0
  %78 = vmatprep.subr.mxu0 0.0
  %79 = vmatpush1.msra.mxu0 0.0
  %80 = vmatprep.subr.mxu0 0.0
  %81 = vmatpush1.msra.mxu0 0.0
  %82 = vmatprep.subr.mxu0 0.0
  %83 = vmatpush1.msra.mxu0 0.0
  %84 = vmatprep.subr.mxu0 0.0
  %85 = vmatpush1.msra.mxu0 0.0
  %86 = vmatprep.subr.mxu0 0.0
  %87 = vmatpush1.msra.mxu0 0.0
  %88 = vmatprep.subr.mxu0 0.0
  %89 = vmatpush1.msra.mxu0 0.0
  %90 = vmatprep.subr.mxu0 0.0
  %91 = vmatpush1.msra.mxu0 0.0
  %92 = vmatprep.subr.mxu0 0.0
  %93 = vmatpush1.msra.mxu0 0.0
  %94 = vmatprep.subr.mxu0 0.0
  %95 = vmatpush1.msra.mxu0 0.0
  %96 = vmatprep.subr.mxu0 0.0
  %97 = vmatpush1.msra.mxu0 0.0
  %98 = vmatprep.mubr.f32.mxu0 0.0
  %99 = vmatmul.mubr.f32.gmra.mrb[0].mxu0 %v29
  %v100 = vpop.f32.mrb[0].mxu0
  %v101 = vadd.f32 %v25, %v100
  %v102 = vpop.f32.mrb[0].mxu0
  %103 = vmatprep.mubr.f32.mxu0 0.0
  %104 = vmatmul.mubr.f32.gmra.mrb[0].mxu0 %v32
  %v105 = vpop.f32.mrb[0].mxu0
  %v106 = vadd.f32 %v25, %v105
  %v107 = vpop.f32.mrb[0].mxu0
  %108 = vdwg.mxu0
  %vm109 = vcmask 523264
  %110 = vst.msk [vmem:[%s3] sm:$0xff] %vm109, %v101
  %111 = vst.msk [vmem:[%s3 + $0x8] sm:$0xff] %vm109, %v106
  // Predicated region
  $region14: #{decoder_saca_forward.2} parent=0 // pred_check
    _
  $region15: #{decoder_saca_forward.2} parent=0 // pred_check_branch
    %113 = sbr.rel (0) target = $region17
  $region16: #{decoder_saca_forward.2} parent=0 // pred_region
    _
  $region17: #{decoder_saca_forward.2} parent=0 // pred_fallthru
    _
  // Predicated region
  $region18: #{decoder_saca_forward.2} parent=0 // pred_check
    _
  $region19: #{decoder_saca_forward.2} parent=0 // pred_check_branch
    %115 = sbr.rel (0) target = $region21
  $region20: #{decoder_saca_forward.2} parent=0 // pred_region
    _
  $region21: #{decoder_saca_forward.2} parent=0 // pred_fallthru
    _

// kernel: decoder_saca_forward.3
$region0: #{decoder_saca_forward.3}
  #allocation0 [shape = 'u32[]', space=smem, size = 0x4, offset = 0x4, fixed_abs, tag = 'smem constant byte address 0x4 - core index']
  #allocation1 [shape = 'u32[144,128]{1,0:T(1,128)}', space=vmem, size = 0x12000, scoped, tag = 'internal scratch']
  %s0 = inlined_call_operand.vmem [shape: f32[2,32], index: 0, kind: input, shape index: {}]
  %s1 = inlined_call_operand.vmem [shape: f32[2,8,64], index: 1, kind: input, shape index: {}]
  %s2 = inlined_call_operand.vmem [shape: f32[2,32], index: 2, kind: input, shape index: {}]
  %s3 = inlined_call_operand.vmem [shape: f32[2,32], index: 3, kind: input, shape index: {}]
  %s4 = inlined_call_operand.hbm [shape: f32[344,128], index: 4, kind: input, shape index: {}]
  %s5 = inlined_call_operand.vmem [shape: f32[2,96], index: 5, kind: output, shape index: {}]
  %s6 = sld [smem:[#allocation0]]
  $region34: #{decoder_saca_forward.3} parent=0
    _
  %s8 = ssub.s32 1, %s6
  %s9 = scalar_select 0, %s8, %s6
  $region1: #{decoder_saca_forward.3} parent=0
    #allocation2 [shape = 'u8[176128]{0}', space=vmem, size = 0x2b000, scoped, tag = 'input window, operand 4, single buffered']
    #allocation3 [shape = 's32[1]{0}', space=sflag, size = 0x4, scoped, tag = 'scoped memory for decoder_saca_forward.3']
    %10 = vsyncpa [#allocation3], 0
    // Predicated region
    $region2: #{decoder_saca_forward.3} parent=1 // pred_check
      _
    $region3: #{decoder_saca_forward.3} parent=1 // pred_check_branch
      %12 = sbr.rel (0) target = $region5
    $region4: #{decoder_saca_forward.3} parent=1 // pred_region
      _
    $region5: #{decoder_saca_forward.3} parent=1 // pred_fallthru
      _
    // Predicated region
    $region6: #{decoder_saca_forward.3} parent=1 // pred_check
      _
    $region7: #{decoder_saca_forward.3} parent=1 // pred_check_branch
      %14 = sbr.rel (0) target = $region9
    $region8: #{decoder_saca_forward.3} parent=1 // pred_region
      _
    $region9: #{decoder_saca_forward.3} parent=1 // pred_fallthru
      _
    // Predicated region
    $region10: #{decoder_saca_forward.3} parent=1 // pred_check
      _
    $region11: #{decoder_saca_forward.3} parent=1 // pred_check_branch
      %16 = sbr.rel (0) target = $region13
    $region12: #{decoder_saca_forward.3} parent=1 // pred_region
      _
    $region13: #{decoder_saca_forward.3} parent=1 // pred_fallthru
      _
    // Predicated region
    $region14: #{decoder_saca_forward.3} parent=1 // pred_check
      _
    $region15: #{decoder_saca_forward.3} parent=1 // pred_check_branch
      %18 = sbr.rel (0) target = $region17
    $region16: #{decoder_saca_forward.3} parent=1 // pred_region
      _
    $region17: #{decoder_saca_forward.3} parent=1 // pred_fallthru
      _
    // Predicated region
    $region18: #{decoder_saca_forward.3} parent=1 // pred_check
      _
    $region19: #{decoder_saca_forward.3} parent=1 // pred_check_branch
      %20 = sbr.rel (0) target = $region21
    $region20: #{decoder_saca_forward.3} parent=1 // pred_region
      %s22 = ssub.s32 5504, 5504
      %23 = vsyncadd [#allocation3], %s22
      %s24 = sshll.u32 [#allocation2], 4
      %s25 = int_to_ptr.vmem [resolvable:$true] %s24
      %30 = dma.hbm_to_vmem [thread:$0]  %s4, 5504, %s25, [#allocation3], 128, 128, 8
    $region21: #{decoder_saca_forward.3} parent=1 // pred_fallthru
      _
    // Predicated region
    $region22: #{decoder_saca_forward.3} parent=1 // pred_check
      _
    $region23: #{decoder_saca_forward.3} parent=1 // pred_check_branch
      %32 = sbr.rel (0) target = $region25
    $region24: #{decoder_saca_forward.3} parent=1 // pred_region
      %33 = dma.done [#allocation3], 5504
    $region25: #{decoder_saca_forward.3} parent=1 // pred_fallthru
      _
    %v34 = vld [vmem:[%s0] sm:$0x3]
    %v35 = vld [vmem:[%s2] sm:$0x3]
    %v36 = vld [vmem:[%s3] sm:$0x3]
    %v37 = vld [vmem:[#allocation2 + $0x130] sm:$0xff]
    %v38 = vld [vmem:[#allocation2 + $0x138] sm:$0xff]
    %v39 = vld [vmem:[#allocation2 + $0x140] sm:$0xff]
    %v40 = vld [vmem:[#allocation2 + $0x148] sm:$0xff]
    %v41 = vld [vmem:[#allocation2 + $0x150] sm:$0xf]
    %v42 = vld [vmem:[#allocation2 + $0x50] sm:$0xff]
    %v43 = vld [vmem:[#allocation2 + $0x58] sm:$0xff]
    %v44 = vld [vmem:[#allocation2 + $0x60] sm:$0xff]
    %v45 = vld [vmem:[#allocation2 + $0x68] sm:$0xff]
    %v46 = vld [vmem:[#allocation2 + $0x70] sm:$0x1]
    %v47 = vlaneseq
    %v48 = vshrl.u32 %v47, 7
    %v49 = vsub.s32 0, %v48
    %v50 = vrot.slane %v46, %v49
    %vm51 = vcmask 261120
    %v53 = vsel %vm51, %v34, 0
    %55 = vmatprep.subr.mxu0 0.0
    %56 = vmatpush1.msra.mxu0 %v42
    %57 = vmatprep.subr.mxu0 0.0
    %58 = vmatpush1.msra.mxu0 %v43
    %59 = vmatprep.subr.mxu0 0.0
    %60 = vmatpush1.msra.mxu0 %v44
    %61 = vmatprep.subr.mxu0 0.0
    %62 = vmatpush1.msra.mxu0 %v45
    %63 = vmatprep.subr.mxu0 0.0
    %64 = vmatpush1.msra.mxu0 0.0
    %65 = vmatprep.subr.mxu0 0.0
    %66 = vmatpush1.msra.mxu0 0.0
    %67 = vmatprep.subr.mxu0 0.0
    %68 = vmatpush1.msra.mxu0 0.0
    %69 = vmatprep.subr.mxu0 0.0
    %70 = vmatpush1.msra.mxu0 0.0
    %71 = vmatprep.subr.mxu0 0.0
    %72 = vmatpush1.msra.mxu0 0.0
    %73 = vmatprep.subr.mxu0 0.0
    %74 = vmatpush1.msra.mxu0 0.0
    %75 = vmatprep.subr.mxu0 0.0
    %76 = vmatpush1.msra.mxu0 0.0
    %77 = vmatprep.subr.mxu0 0.0
    %78 = vmatpush1.msra.mxu0 0.0
    %79 = vmatprep.subr.mxu0 0.0
    %80 = vmatpush1.msra.mxu0 0.0
    %81 = vmatprep.subr.mxu0 0.0
    %82 = vmatpush1.msra.mxu0 0.0
    %83 = vmatprep.subr.mxu0 0.0
    %84 = vmatpush1.msra.mxu0 0.0
    %85 = vmatprep.subr.mxu0 0.0
    %86 = vmatpush1.msra.mxu0 0.0
    %87 = vmatprep.subr.mxu0 0.0
    %88 = vmatpush1.msra.mxu0 0.0
    %89 = vmatprep.subr.mxu0 0.0
    %90 = vmatpush1.msra.mxu0 0.0
    %91 = vmatprep.subr.mxu0 0.0
    %92 = vmatpush1.msra.mxu0 0.0
    %93 = vmatprep.subr.mxu0 0.0
    %94 = vmatpush1.msra.mxu0 0.0
    %95 = vmatprep.subr.mxu0 0.0
    %96 = vmatpush1.msra.mxu0 0.0
    %97 = vmatprep.subr.mxu0 0.0
    %98 = vmatpush1.msra.mxu0 0.0
    %99 = vmatprep.subr.mxu0 0.0
    %100 = vmatpush1.msra.mxu0 0.0
    %101 = vmatprep.subr.mxu0 0.0
    %102 = vmatpush1.msra.mxu0 0.0
    %103 = vmatprep.subr.mxu0 0.0
    %104 = vmatpush1.msra.mxu0 0.0
    %105 = vmatprep.subr.mxu0 0.0
    %106 = vmatpush1.msra.mxu0 0.0
    %107 = vmatprep.subr.mxu0 0.0
    %108 = vmatpush1.msra.mxu0 0.0
    %109 = vmatprep.subr.mxu0 0.0
    %110 = vmatpush1.msra.mxu0 0.0
    %111 = vmatprep.subr.mxu0 0.0
    %112 = vmatpush1.msra.mxu0 0.0
    %113 = vmatprep.subr.mxu0 0.0
    %114 = vmatpush1.msra.mxu0 0.0
    %115 = vmatprep.subr.mxu0 0.0
    %116 = vmatpush1.msra.mxu0 0.0
    %117 = vmatprep.subr.mxu0 0.0
    %118 = vmatpush1.msra.mxu0 0.0
    %119 = vmatprep.mubr.f32.mxu0 0.0
    %120 = vmatmul.mubr.f32.gmra.mrb[0].mxu0 %v53
    %v121 = vpop.f32.mrb[0].mxu0
    %v122 = vadd.f32 %v50, %v121
    %v123 = vpop.f32.mrb[0].mxu0
    %124 = vdwg.mxu0
    %v125 = vld [vmem:[#allocation2 + $0x78] sm:$0xff]
    %v126 = vld [vmem:[#allocation2 + $0x80] sm:$0xff]
    %v127 = vld [vmem:[#allocation2 + $0x88] sm:$0xff]
    %v128 = vld [vmem:[#allocation2 + $0x90] sm:$0xff]
    %v129 = vld [vmem:[#allocation2 + $0x98] sm:$0x1]
    %v130 = vlaneseq
    %v131 = vshrl.u32 %v130, 7
    %v132 = vsub.s32 0, %v131
    %v133 = vrot.slane %v129, %v132
    %v135 = vsel %vm51, %v122, 0
    %137 = vmatprep.subr.mxu0 0.0
    %138 = vmatpush1.msra.mxu0 %v125
    %139 = vmatprep.subr.mxu0 0.0
    %140 = vmatpush1.msra.mxu0 %v126
    %141 = vmatprep.subr.mxu0 0.0
    %142 = vmatpush1.msra.mxu0 %v127
    %143 = vmatprep.subr.mxu0 0.0
    %144 = vmatpush1.msra.mxu0 %v128
    %145 = vmatprep.subr.mxu0 0.0
    %146 = vmatpush1.msra.mxu0 0.0
    %147 = vmatprep.subr.mxu0 0.0
    %148 = vmatpush1.msra.mxu0 0.0
    %149 = vmatprep.subr.mxu0 0.0
    %150 = vmatpush1.msra.mxu0 0.0
    %151 = vmatprep.subr.mxu0 0.0
    %152 = vmatpush1.msra.mxu0 0.0
    %153 = vmatprep.subr.mxu0 0.0
    %154 = vmatpush1.msra.mxu0 0.0
    %155 = vmatprep.subr.mxu0 0.0
    %156 = vmatpush1.msra.mxu0 0.0
    %157 = vmatprep.subr.mxu0 0.0
    %158 = vmatpush1.msra.mxu0 0.0
    %159 = vmatprep.subr.mxu0 0.0
    %160 = vmatpush1.msra.mxu0 0.0
    %161 = vmatprep.subr.mxu0 0.0
    %162 = vmatpush1.msra.mxu0 0.0
    %163 = vmatprep.subr.mxu0 0.0
    %164 = vmatpush1.msra.mxu0 0.0
    %165 = vmatprep.subr.mxu0 0.0
    %166 = vmatpush1.msra.mxu0 0.0
    %167 = vmatprep.subr.mxu0 0.0
    %168 = vmatpush1.msra.mxu0 0.0
    %169 = vmatprep.subr.mxu0 0.0
    %170 = vmatpush1.msra.mxu0 0.0
    %171 = vmatprep.subr.mxu0 0.0
    %172 = vmatpush1.msra.mxu0 0.0
    %173 = vmatprep.subr.mxu0 0.0
    %174 = vmatpush1.msra.mxu0 0.0
    %175 = vmatprep.subr.mxu0 0.0
    %176 = vmatpush1.msra.mxu0 0.0
    %177 = vmatprep.subr.mxu0 0.0
    %178 = vmatpush1.msra.mxu0 0.0
    %179 = vmatprep.subr.mxu0 0.0
    %180 = vmatpush1.msra.mxu0 0.0
    %181 = vmatprep.subr.mxu0 0.0
    %182 = vmatpush1.msra.mxu0 0.0
    %183 = vmatprep.subr.mxu0 0.0
    %184 = vmatpush1.msra.mxu0 0.0
    %185 = vmatprep.subr.mxu0 0.0
    %186 = vmatpush1.msra.mxu0 0.0
    %187 = vmatprep.subr.mxu0 0.0
    %188 = vmatpush1.msra.mxu0 0.0
    %189 = vmatprep.subr.mxu0 0.0
    %190 = vmatpush1.msra.mxu0 0.0
    %191 = vmatprep.subr.mxu0 0.0
    %192 = vmatpush1.msra.mxu0 0.0
    %193 = vmatprep.subr.mxu0 0.0
    %194 = vmatpush1.msra.mxu0 0.0
    %195 = vmatprep.subr.mxu0 0.0
    %196 = vmatpush1.msra.mxu0 0.0
    %197 = vmatprep.subr.mxu0 0.0
    %198 = vmatpush1.msra.mxu0 0.0
    %199 = vmatprep.subr.mxu0 0.0
    %200 = vmatpush1.msra.mxu0 0.0
    %201 = vmatprep.mubr.f32.mxu0 0.0
    %202 = vmatmul.mubr.f32.gmra.mrb[0].mxu0 %v135
    %v203 = vpop.f32.mrb[0].mxu0
    %v204 = vadd.f32 %v133, %v203
    %v205 = vpop.f32.mrb[0].mxu0
    %206 = vdwg.mxu0
    %v207 = vld [vmem:[%s1] sm:$0xff]
    %v208 = vld [vmem:[%s1 + $0x8] sm:$0xff]
    %v211 = vunpack.c.l.s4 1966171168
    %v212 = vunpack.c.0.s8 %v211
    %v213 = vlaneseq
    %v214 = vshrl.u32 %v213, 7
    %v215 = vsub.s32 %v212, %v214
    %v216 = vrot.slane %v204, %v215
    %v217 = vcombine.high %v216, %v216
    %v219 = vunpack.c.l.s4 1966171168
    %v220 = vunpack.c.0.s8 %v219
    %v221 = vlaneseq
    %v222 = vshrl.u32 %v221, 7
    %v223 = vsub.s32 %v220, %v222
    %v224 = vrot.slane %v216, %v223
    %v226 = vunpack.c.l.s4 1966171168
    %v227 = vunpack.c.0.s8 %v226
    %v228 = vlaneseq
    %v229 = vshrl.u32 %v228, 7
    %v230 = vsub.s32 %v227, %v229
    %v231 = vrot.slane %v217, %v230
    %v232 = vlaneseq
    %v233 = vshrl.u32 %v232, 7
    %v234 = vsub.s32 0, %v233
    %v235 = vrot.slane %v224, %v234
    %v236 = vlaneseq
    %v237 = vshrl.u32 %v236, 7
    %v238 = vsub.s32 0, %v237
    %v239 = vrot.slane %v231, %v238
    %v242 = vmul.f32 %v235, %v207
    %v243 = vmul.f32 %v239, %v208
    %v245 = vsel %vm51, %v242, 0
    %v248 = vsel %vm51, %v243, 0
    %250 = vmatprep.subr.mxu0 0.0
    %251 = vmatpush1.msra.mxu0 %v37
    %252 = vmatprep.subr.mxu0 0.0
    %253 = vmatpush1.msra.mxu0 %v38
    %254 = vmatprep.subr.mxu0 0.0
    %255 = vmatpush1.msra.mxu0 %v39
    %256 = vmatprep.subr.mxu0 0.0
    %257 = vmatpush1.msra.mxu0 %v40
    %258 = vmatprep.subr.mxu0 0.0
    %259 = vmatpush1.msra.mxu0 0.0
    %260 = vmatprep.subr.mxu0 0.0
    %261 = vmatpush1.msra.mxu0 0.0
    %262 = vmatprep.subr.mxu0 0.0
    %263 = vmatpush1.msra.mxu0 0.0
    %264 = vmatprep.subr.mxu0 0.0
    %265 = vmatpush1.msra.mxu0 0.0
    %266 = vmatprep.subr.mxu0 0.0
    %267 = vmatpush1.msra.mxu0 0.0
    %268 = vmatprep.subr.mxu0 0.0
    %269 = vmatpush1.msra.mxu0 0.0
    %270 = vmatprep.subr.mxu0 0.0
    %271 = vmatpush1.msra.mxu0 0.0
    %272 = vmatprep.subr.mxu0 0.0
    %273 = vmatpush1.msra.mxu0 0.0
    %274 = vmatprep.subr.mxu0 0.0
    %275 = vmatpush1.msra.mxu0 0.0
    %276 = vmatprep.subr.mxu0 0.0
    %277 = vmatpush1.msra.mxu0 0.0
    %278 = vmatprep.subr.mxu0 0.0
    %279 = vmatpush1.msra.mxu0 0.0
    %280 = vmatprep.subr.mxu0 0.0
    %281 = vmatpush1.msra.mxu0 0.0
    %282 = vmatprep.subr.mxu0 0.0
    %283 = vmatpush1.msra.mxu0 0.0
    %284 = vmatprep.subr.mxu0 0.0
    %285 = vmatpush1.msra.mxu0 0.0
    %286 = vmatprep.subr.mxu0 0.0
    %287 = vmatpush1.msra.mxu0 0.0
    %288 = vmatprep.subr.mxu0 0.0
    %289 = vmatpush1.msra.mxu0 0.0
    %290 = vmatprep.subr.mxu0 0.0
    %291 = vmatpush1.msra.mxu0 0.0
    %292 = vmatprep.subr.mxu0 0.0
    %293 = vmatpush1.msra.mxu0 0.0
    %294 = vmatprep.subr.mxu0 0.0
    %295 = vmatpush1.msra.mxu0 0.0
    %296 = vmatprep.subr.mxu0 0.0
    %297 = vmatpush1.msra.mxu0 0.0
    %298 = vmatprep.subr.mxu0 0.0
    %299 = vmatpush1.msra.mxu0 0.0
    %300 = vmatprep.subr.mxu0 0.0
    %301 = vmatpush1.msra.mxu0 0.0
    %302 = vmatprep.subr.mxu0 0.0
    %303 = vmatpush1.msra.mxu0 0.0
    %304 = vmatprep.subr.mxu0 0.0
    %305 = vmatpush1.msra.mxu0 0.0
    %306 = vmatprep.subr.mxu0 0.0
    %307 = vmatpush1.msra.mxu0 0.0
    %308 = vmatprep.subr.mxu0 0.0
    %309 = vmatpush1.msra.mxu0 0.0
    %310 = vmatprep.subr.mxu0 0.0
    %311 = vmatpush1.msra.mxu0 0.0
    %312 = vmatprep.subr.mxu0 0.0
    %313 = vmatpush1.msra.mxu0 0.0
    %314 = vmatprep.mubr.f32.mxu0 0.0
    %315 = vmatmul.mubr.f32.gmra.mrb[0].mxu0 %v245
    %v316 = vpop.f32.mrb[0].mxu0
    %v317 = vadd.f32 0.0, %v316
    %v318 = vpop.f32.mrb[0].mxu0
    %319 = vmatprep.mubr.f32.mxu0 0.0
    %320 = vmatmul.mubr.f32.gmra.mrb[0].mxu0 %v248
    %v321 = vpop.f32.mrb[0].mxu0
    %v322 = vadd.f32 0.0, %v321
    %v323 = vpop.f32.mrb[0].mxu0
    %324 = vdwg.mxu0
    %vm325 = vcmask 31744
    %v326 = vsel %vm325, %v317, -inf
    %v327 = vrot.slane %v326, 4
    %v328 = vmax.f32 %v326, %v327
    %v329 = vrot.slane %v328, 2
    %v330 = vmax.f32 %v328, %v329
    %v331 = vrot.slane %v330, 1
    %v332 = vmax.f32 %v330, %v331
    %v333 = vsel %vm325, %v322, -inf
    %v334 = vrot.slane %v333, 4
    %v335 = vmax.f32 %v333, %v334
    %v336 = vrot.slane %v335, 2
    %v337 = vmax.f32 %v335, %v336
    %v338 = vrot.slane %v337, 1
    %v339 = vmax.f32 %v337, %v338
    %v340 = vsub.f32 %v317, %v332
    %v341 = vsub.f32 %v322, %v339
    %v342 = vmul.f32 %v340, 1.442695
    %v343 = vpow.pop %v342
    %v344 = vmul.f32 %v341, 1.442695
    %v345 = vpow.pop %v344
    %v346 = vsel %vm325, %v343, 0.0
    %v347 = vrot.slane %v346, 4
    %v348 = vadd.f32 %v346, %v347
    %v349 = vrot.slane %v348, 2
    %v350 = vadd.f32 %v348, %v349
    %v351 = vrot.slane %v350, 1
    %v352 = vadd.f32 %v350, %v351
    %v353 = vsel %vm325, %v345, 0.0
    %v354 = vrot.slane %v353, 4
    %v355 = vadd.f32 %v353, %v354
    %v356 = vrot.slane %v355, 2
    %v357 = vadd.f32 %v355, %v356
    %v358 = vrot.slane %v357, 1
    %v359 = vadd.f32 %v357, %v358
    %v360 = vrcp.pop %v352
    %v361 = vmul.f32 %v343, %v360
    %v362 = vrcp.pop %v359
    %v363 = vmul.f32 %v345, %v362
    %v365 = vsel %vm325, %v361, 0
    %v368 = vsel %vm325, %v363, 0
    %vm370 = vcmask 1043456
    %v372 = vsel %vm370, %v41, 0
    %374 = vmatprep.subr.mxu0 0.0
    %375 = vmatpush1.msra.mxu0 %v372
    %376 = vmatprep.subr.mxu0 0.0
    %377 = vmatpush1.msra.mxu0 0.0
    %378 = vmatprep.subr.mxu0 0.0
    %379 = vmatpush1.msra.mxu0 0.0
    %380 = vmatprep.subr.mxu0 0.0
    %381 = vmatpush1.msra.mxu0 0.0
    %382 = vmatprep.subr.mxu0 0.0
    %383 = vmatpush1.msra.mxu0 0.0
    %384 = vmatprep.subr.mxu0 0.0
    %385 = vmatpush1.msra.mxu0 0.0
    %386 = vmatprep.subr.mxu0 0.0
    %387 = vmatpush1.msra.mxu0 0.0
    %388 = vmatprep.subr.mxu0 0.0
    %389 = vmatpush1.msra.mxu0 0.0
    %390 = vmatprep.subr.mxu0 0.0
    %391 = vmatpush1.msra.mxu0 0.0
    %392 = vmatprep.subr.mxu0 0.0
    %393 = vmatpush1.msra.mxu0 0.0
    %394 = vmatprep.subr.mxu0 0.0
    %395 = vmatpush1.msra.mxu0 0.0
    %396 = vmatprep.subr.mxu0 0.0
    %397 = vmatpush1.msra.mxu0 0.0
    %398 = vmatprep.subr.mxu0 0.0
    %399 = vmatpush1.msra.mxu0 0.0
    %400 = vmatprep.subr.mxu0 0.0
    %401 = vmatpush1.msra.mxu0 0.0
    %402 = vmatprep.subr.mxu0 0.0
    %403 = vmatpush1.msra.mxu0 0.0
    %404 = vmatprep.subr.mxu0 0.0
    %405 = vmatpush1.msra.mxu0 0.0
    %406 = vmatprep.subr.mxu0 0.0
    %407 = vmatpush1.msra.mxu0 0.0
    %408 = vmatprep.subr.mxu0 0.0
    %409 = vmatpush1.msra.mxu0 0.0
    %410 = vmatprep.subr.mxu0 0.0
    %411 = vmatpush1.msra.mxu0 0.0
    %412 = vmatprep.subr.mxu0 0.0
    %413 = vmatpush1.msra.mxu0 0.0
    %414 = vmatprep.subr.mxu0 0.0
    %415 = vmatpush1.msra.mxu0 0.0
    %416 = vmatprep.subr.mxu0 0.0
    %417 = vmatpush1.msra.mxu0 0.0
    %418 = vmatprep.subr.mxu0 0.0
    %419 = vmatpush1.msra.mxu0 0.0
    %420 = vmatprep.subr.mxu0 0.0
    %421 = vmatpush1.msra.mxu0 0.0
    %422 = vmatprep.subr.mxu0 0.0
    %423 = vmatpush1.msra.mxu0 0.0
    %424 = vmatprep.subr.mxu0 0.0
    %425 = vmatpush1.msra.mxu0 0.0
    %426 = vmatprep.subr.mxu0 0.0
    %427 = vmatpush1.msra.mxu0 0.0
    %428 = vmatprep.subr.mxu0 0.0
    %429 = vmatpush1.msra.mxu0 0.0
    %430 = vmatprep.subr.mxu0 0.0
    %431 = vmatpush1.msra.mxu0 0.0
    %432 = vmatprep.subr.mxu0 0.0
    %433 = vmatpush1.msra.mxu0 0.0
    %434 = vmatprep.subr.mxu0 0.0
    %435 = vmatpush1.msra.mxu0 0.0
    %436 = vmatprep.subr.mxu0 0.0
    %437 = vmatpush1.msra.mxu0 0.0
    %438 = vmatprep.mubr.f32.mxu0 0.0
    %439 = vmatmul.mubr.f32.gmra.mrb[0].mxu0 %v365
    %v440 = vpop.f32.mrb[0].mxu0
    %v441 = vadd.f32 0.0, %v440
    %v442 = vpop.f32.mrb[0].mxu0
    %443 = vmatprep.mubr.f32.mxu0 0.0
    %444 = vmatmul.mubr.f32.gmra.mrb[0].mxu0 %v368
    %v445 = vpop.f32.mrb[0].mxu0
    %v446 = vadd.f32 0.0, %v445
    %v447 = vpop.f32.mrb[0].mxu0
    %448 = vdwg.mxu0
    %451 = vrot.lane.b32.xlu0 %v207, 96
    %v452 = vpop.permute.xlu0 %451
    %453 = vrot.lane.b32.xlu0 %v208, 96
    %v454 = vpop.permute.xlu0 %453
    %v457 = vmul.f32 %v441, %v452
    %v458 = vmul.f32 %v446, %v454
    %v459 = vsel %vm51, %v457, 0.0
    %v460 = vrot.slane %v459, 4
    %v461 = vadd.f32 %v459, %v460
    %v462 = vrot.slane %v461, 2
    %v463 = vadd.f32 %v461, %v462
    %v464 = vrot.slane %v463, 1
    %v465 = vadd.f32 %v463, %v464
    %v466 = vsel %vm51, %v458, 0.0
    %v467 = vrot.slane %v466, 4
    %v468 = vadd.f32 %v466, %v467
    %v469 = vrot.slane %v468, 2
    %v470 = vadd.f32 %v468, %v469
    %v471 = vrot.slane %v470, 1
    %v472 = vadd.f32 %v470, %v471
    %vm475 = vcmask 1041409
    %v476 = vsel %vm475, %v472, %v465
    %477 = vrot.lane.b32.xlu0 %v476, 32
    %v478 = vpop.permute.xlu0 %477
    %481 = vrot.lane.b32.xlu0 %v35, 64
    %v482 = vpop.permute.xlu0 %481
    %v484 = vsel %vm51, %v34, %v478
    %vm485 = vcmask 523264
    %v486 = vsel %vm485, %v484, %v482
    %v487 = vld [vmem:[#allocation2 + $0xa0] sm:$0xff]
    %v488 = vld [vmem:[#allocation2 + $0xa8] sm:$0xff]
    %v489 = vld [vmem:[#allocation2 + $0xb0] sm:$0xff]
    %v490 = vld [vmem:[#allocation2 + $0xb8] sm:$0xff]
    %v491 = vld [vmem:[#allocation2 + $0xc0] sm:$0xff]
    %v492 = vld [vmem:[#allocation2 + $0xc8] sm:$0xff]
    %v493 = vld [vmem:[#allocation2 + $0xd0] sm:$0xff]
    %v494 = vld [vmem:[#allocation2 + $0xd8] sm:$0xff]
    %v495 = vld [vmem:[#allocation2 + $0xe0] sm:$0xff]
    %v496 = vld [vmem:[#allocation2 + $0xe8] sm:$0xff]
    %v497 = vld [vmem:[#allocation2 + $0xf0] sm:$0xff]
    %v498 = vld [vmem:[#allocation2 + $0xf8] sm:$0xff]
    %v499 = vld [vmem:[#allocation2 + $0x100] sm:$0x1]
    %v500 = vlaneseq
    %v501 = vshrl.u32 %v500, 7
    %v502 = vsub.s32 0, %v501
    %v503 = vrot.slane %v499, %v502
    %vm504 = vcmask 785408
    %v506 = vsel %vm504, %v486, 0
    %508 = vmatprep.subr.mxu0 0.0
    %509 = vmatpush1.msra.mxu0 %v487
    %510 = vmatprep.subr.mxu0 0.0
    %511 = vmatpush1.msra.mxu0 %v488
    %512 = vmatprep.subr.mxu0 0.0
    %513 = vmatpush1.msra.mxu0 %v489
    %514 = vmatprep.subr.mxu0 0.0
    %515 = vmatpush1.msra.mxu0 %v490
    %516 = vmatprep.subr.mxu0 0.0
    %517 = vmatpush1.msra.mxu0 %v491
    %518 = vmatprep.subr.mxu0 0.0
    %519 = vmatpush1.msra.mxu0 %v492
    %520 = vmatprep.subr.mxu0 0.0
    %521 = vmatpush1.msra.mxu0 %v493
    %522 = vmatprep.subr.mxu0 0.0
    %523 = vmatpush1.msra.mxu0 %v494
    %524 = vmatprep.subr.mxu0 0.0
    %525 = vmatpush1.msra.mxu0 %v495
    %526 = vmatprep.subr.mxu0 0.0
    %527 = vmatpush1.msra.mxu0 %v496
    %528 = vmatprep.subr.mxu0 0.0
    %529 = vmatpush1.msra.mxu0 %v497
    %530 = vmatprep.subr.mxu0 0.0
    %531 = vmatpush1.msra.mxu0 %v498
    %532 = vmatprep.subr.mxu0 0.0
    %533 = vmatpush1.msra.mxu0 0.0
    %534 = vmatprep.subr.mxu0 0.0
    %535 = vmatpush1.msra.mxu0 0.0
    %536 = vmatprep.subr.mxu0 0.0
    %537 = vmatpush1.msra.mxu0 0.0
    %538 = vmatprep.subr.mxu0 0.0
    %539 = vmatpush1.msra.mxu0 0.0
    %540 = vmatprep.subr.mxu0 0.0
    %541 = vmatpush1.msra.mxu0 0.0
    %542 = vmatprep.subr.mxu0 0.0
    %543 = vmatpush1.msra.mxu0 0.0
    %544 = vmatprep.subr.mxu0 0.0
    %545 = vmatpush1.msra.mxu0 0.0
    %546 = vmatprep.subr.mxu0 0.0
    %547 = vmatpush1.msra.mxu0 0.0
    %548 = vmatprep.subr.mxu0 0.0
    %549 = vmatpush1.msra.mxu0 0.0
    %550 = vmatprep.subr.mxu0 0.0
    %551 = vmatpush1.msra.mxu0 0.0
    %552 = vmatprep.subr.mxu0 0.0
    %553 = vmatpush1.msra.mxu0 0.0
    %554 = vmatprep.subr.mxu0 0.0
    %555 = vmatpush1.msra.mxu0 0.0
    %556 = vmatprep.subr.mxu0 0.0
    %557 = vmatpush1.msra.mxu0 0.0
    %558 = vmatprep.subr.mxu0 0.0
    %559 = vmatpush1.msra.mxu0 0.0
    %560 = vmatprep.subr.mxu0 0.0
    %561 = vmatpush1.msra.mxu0 0.0
    %562 = vmatprep.subr.mxu0 0.0
    %563 = vmatpush1.msra.mxu0 0.0
    %564 = vmatprep.subr.mxu0 0.0
    %565 = vmatpush1.msra.mxu0 0.0
    %566 = vmatprep.subr.mxu0 0.0
    %567 = vmatpush1.msra.mxu0 0.0
    %568 = vmatprep.subr.mxu0 0.0
    %569 = vmatpush1.msra.mxu0 0.0
    %570 = vmatprep.subr.mxu0 0.0
    %571 = vmatpush1.msra.mxu0 0.0
    %572 = vmatprep.mubr.f32.mxu0 0.0
    %573 = vmatmul.mubr.f32.gmra.mrb[0].mxu0 %v506
    %v574 = vpop.f32.mrb[0].mxu0
    %v575 = vadd.f32 %v503, %v574
    %v576 = vpop.f32.mrb[0].mxu0
    %577 = vdwg.mxu0
    %v578 = vxor.u32 %v575, 2147483648
    %v579 = vmul.f32 %v578, 1.442695
    %v580 = vpow.pop %v579
    %v581 = vadd.f32 %v580, 1.0
    %v582 = vrcp.pop %v581
    %v583 = vmul.f32 1.0, %v582
    %v584 = vtanh.pop %v575
    %586 = vrot.lane.b32.xlu0 %v36, 32
    %v587 = vpop.permute.xlu0 %586
    %v589 = vmul.f32 %v583, %v587
    %591 = vrot.lane.b32.xlu0 %v584, 32
    %v592 = vpop.permute.xlu0 %591
    %v594 = vmul.f32 %v583, %v592
    %596 = vrot.lane.b32.xlu0 %v594, 32
    %v597 = vpop.permute.xlu0 %596
    %v599 = vadd.f32 %v589, %v597
    %v600 = vtanh.pop %v599
    %602 = vrot.lane.b32.xlu0 %v600, 32
    %v603 = vpop.permute.xlu0 %602
    %v605 = vmul.f32 %v583, %v603
    %v606 = vld [vmem:[#allocation2 + $0x108] sm:$0xff]
    %v607 = vld [vmem:[#allocation2 + $0x110] sm:$0xff]
    %v608 = vld [vmem:[#allocation2 + $0x118] sm:$0xff]
    %v609 = vld [vmem:[#allocation2 + $0x120] sm:$0xff]
    %v610 = vld [vmem:[#allocation2 + $0x128] sm:$0x1]
    %v611 = vlaneseq
    %v612 = vshrl.u32 %v611, 7
    %v613 = vsub.s32 0, %v612
    %v614 = vrot.slane %v610, %v613
    %616 = vrot.lane.b32.xlu0 %v605, 64
    %v617 = vpop.permute.xlu0 %616
    %v618 = vsel %vm51, %v617, 0
    %620 = vmatprep.subr.mxu0 0.0
    %621 = vmatpush1.msra.mxu0 %v606
    %622 = vmatprep.subr.mxu0 0.0
    %623 = vmatpush1.msra.mxu0 %v607
    %624 = vmatprep.subr.mxu0 0.0
    %625 = vmatpush1.msra.mxu0 %v608
    %626 = vmatprep.subr.mxu0 0.0
    %627 = vmatpush1.msra.mxu0 %v609
    %628 = vmatprep.subr.mxu0 0.0
    %629 = vmatpush1.msra.mxu0 0.0
    %630 = vmatprep.subr.mxu0 0.0
    %631 = vmatpush1.msra.mxu0 0.0
    %632 = vmatprep.subr.mxu0 0.0
    %633 = vmatpush1.msra.mxu0 0.0
    %634 = vmatprep.subr.mxu0 0.0
    %635 = vmatpush1.msra.mxu0 0.0
    %636 = vmatprep.subr.mxu0 0.0
    %637 = vmatpush1.msra.mxu0 0.0
    %638 = vmatprep.subr.mxu0 0.0
    %639 = vmatpush1.msra.mxu0 0.0
    %640 = vmatprep.subr.mxu0 0.0
    %641 = vmatpush1.msra.mxu0 0.0
    %642 = vmatprep.subr.mxu0 0.0
    %643 = vmatpush1.msra.mxu0 0.0
    %644 = vmatprep.subr.mxu0 0.0
    %645 = vmatpush1.msra.mxu0 0.0
    %646 = vmatprep.subr.mxu0 0.0
    %647 = vmatpush1.msra.mxu0 0.0
    %648 = vmatprep.subr.mxu0 0.0
    %649 = vmatpush1.msra.mxu0 0.0
    %650 = vmatprep.subr.mxu0 0.0
    %651 = vmatpush1.msra.mxu0 0.0
    %652 = vmatprep.subr.mxu0 0.0
    %653 = vmatpush1.msra.mxu0 0.0
    %654 = vmatprep.subr.mxu0 0.0
    %655 = vmatpush1.msra.mxu0 0.0
    %656 = vmatprep.subr.mxu0 0.0
    %657 = vmatpush1.msra.mxu0 0.0
    %658 = vmatprep.subr.mxu0 0.0
    %659 = vmatpush1.msra.mxu0 0.0
    %660 = vmatprep.subr.mxu0 0.0
    %661 = vmatpush1.msra.mxu0 0.0
    %662 = vmatprep.subr.mxu0 0.0
    %663 = vmatpush1.msra.mxu0 0.0
    %664 = vmatprep.subr.mxu0 0.0
    %665 = vmatpush1.msra.mxu0 0.0
    %666 = vmatprep.subr.mxu0 0.0
    %667 = vmatpush1.msra.mxu0 0.0
    %668 = vmatprep.subr.mxu0 0.0
    %669 = vmatpush1.msra.mxu0 0.0
    %670 = vmatprep.subr.mxu0 0.0
    %671 = vmatpush1.msra.mxu0 0.0
    %672 = vmatprep.subr.mxu0 0.0
    %673 = vmatpush1.msra.mxu0 0.0
    %674 = vmatprep.subr.mxu0 0.0
    %675 = vmatpush1.msra.mxu0 0.0
    %676 = vmatprep.subr.mxu0 0.0
    %677 = vmatpush1.msra.mxu0 0.0
    %678 = vmatprep.subr.mxu0 0.0
    %679 = vmatpush1.msra.mxu0 0.0
    %680 = vmatprep.subr.mxu0 0.0
    %681 = vmatpush1.msra.mxu0 0.0
    %682 = vmatprep.subr.mxu0 0.0
    %683 = vmatpush1.msra.mxu0 0.0
    %684 = vmatprep.mubr.f32.mxu0 0.0
    %685 = vmatmul.mubr.f32.gmra.mrb[0].mxu0 %v618
    %v686 = vpop.f32.mrb[0].mxu0
    %v687 = vadd.f32 %v614, %v686
    %v688 = vpop.f32.mrb[0].mxu0
    %689 = vdwg.mxu0
    %vm690 = vcmask 254976
    %691 = vst.msk [vmem:[%s5] sm:$0x3] %vm690, %v687
    %692 = vrot.lane.b32.xlu0 %v605, 96
    %v693 = vpop.permute.xlu0 %692
    %vm695 = vcmask 517376
    %696 = vst.msk [vmem:[%s5] sm:$0x3] %vm695, %v693
    %698 = vrot.lane.b32.xlu0 %v599, 32
    %v699 = vpop.permute.xlu0 %698
    %vm701 = vcmask 779776
    %702 = vst.msk [vmem:[%s5] sm:$0x3] %vm701, %v699
    // Predicated region
    $region26: #{decoder_saca_forward.3} parent=1 // pred_check
      _
    $region27: #{decoder_saca_forward.3} parent=1 // pred_check_branch
      %704 = sbr.rel (0) target = $region29
    $region28: #{decoder_saca_forward.3} parent=1 // pred_region
      _
    $region29: #{decoder_saca_forward.3} parent=1 // pred_fallthru
      _
    // Predicated region
    $region30: #{decoder_saca_forward.3} parent=1 // pred_check
      _
    $region31: #{decoder_saca_forward.3} parent=1 // pred_check_branch
      %706 = sbr.rel (0) target = $region33
    $region32: #{decoder_saca_forward.3} parent=1 // pred_region
      _
    $region33: #{decoder_saca_forward.3} parent=1 // pred_fallthru
      _
    %707 = vsyncpa [#allocation3], 1

</llo_original>
